<compile_context>
chip_gen: v7x
topology: tpu7x:2x2x1
jax: 0.10.0
libtpu: 0.0.40
codegen_flags: <defaults>
</compile_context>

<pallas_src>
import functools

import jax
import jax.numpy as jnp
from jax.experimental import pallas as pl
from jax.experimental.pallas import tpu as pltpu


def _round_up(a, m):
    return -(-a // m) * m


# ---------------------------------------------------------------------------
# Fused Pallas kernel: encoder -> batched VQ -> decoder, one pallas_call.
# All parameters live in a single pre-packed VMEM slab `p_ref`; static row
# offsets (Python ints) are baked in via functools.partial.
# ---------------------------------------------------------------------------
def _fused_vqvae_kernel(x_ref, p_ref, out_ref, *,
                        enc_meta, dec_meta, embT_off, embbd_off, embsq_off,
                        nb_z, K, D, nb_links, out_cols):
    ZD = nb_z * D
    ZK = nb_z * K

    # ---- encoder (all layers fused, activations stay in vregs) ------------
    h = x_ref[...]                                                   # (TB, nb_links)
    for i, (off, din, dout) in enumerate(enc_meta):
        w = p_ref[off:off + din, 0:dout]
        b = p_ref[off + din:off + din + 1, 0:dout]
        h = jnp.dot(h, w, preferred_element_type=jnp.float32) + b
        if i < len(enc_meta) - 1:
            h = jnp.maximum(h, 0.0)
    ze = h                                                           # (TB, ZD)
    TB = ze.shape[0]

    # ---- vector quantization, batched over all latent slots ---------------
    # Block-diagonal emb^T -> one lane-dense cross matmul for every slot.
    embT = p_ref[embT_off:embT_off + ZD, 0:ZK]                       # (ZD, ZK)
    cross = jnp.dot(ze, embT, preferred_element_type=jnp.float32)    # (TB, ZK)
    emb_sq = p_ref[embsq_off:embsq_off + 1, 0:ZK]                    # (1, ZK)
    # ||z||^2 is constant along the codebook axis -> dropped from the score.
    score = emb_sq - 2.0 * cross                                     # (TB, ZK)

    score3 = score.reshape(TB, nb_z, K)
    iota_k = jax.lax.broadcasted_iota(jnp.int32, (TB, nb_z, K), 2)
    smin = jnp.min(score3, axis=-1, keepdims=True)
    # first-occurrence argmin (matches torch.argmin tie-break)
    idx3 = jnp.min(jnp.where(score3 <= smin, iota_k, K),
                   axis=-1, keepdims=True)                           # (TB, nb_z, 1)

    # One-hot gather through the block-diagonal codebook: one MXU push.
    onehot = (iota_k == idx3).astype(jnp.float32).reshape(TB, ZK)    # (TB, ZK)
    embbd = p_ref[embbd_off:embbd_off + ZK, 0:ZD]                    # (ZK, ZD)
    zq = jnp.dot(onehot, embbd, preferred_element_type=jnp.float32)  # (TB, ZD)

    # ---- decoder (straight-through forward value == z_q) ------------------
    h = zq
    for i, (off, din, dout) in enumerate(dec_meta):
        w = p_ref[off:off + din, 0:dout]
        b = p_ref[off + din:off + din + 1, 0:dout]
        h = jnp.dot(h, w, preferred_element_type=jnp.float32) + b
        if i < len(dec_meta) - 1:
            h = jnp.maximum(h, 0.0)
    xhat = h                                                         # (TB, nb_links)

    # ---- single lane-dense output slab: [z_e | z_q | x_hat | idx | pad] ---
    idxf = idx3.astype(jnp.float32).reshape(TB, nb_z)  # indices < K: exact in f32
    used = 2 * ZD + nb_links + nb_z
    parts = [ze, zq, xhat, idxf]
    if out_cols > used:
        parts.append(jnp.zeros((TB, out_cols - used), jnp.float32))
    out_ref[...] = jnp.concatenate(parts, axis=1)                    # (TB, out_cols)


# ---------------------------------------------------------------------------
# Parameter init (deterministic, mirrors nn.Linear / nn.Embedding init scheme)
# ---------------------------------------------------------------------------
def _init_linear(key, fan_in, fan_out):
    kw, kb = jax.random.split(key)
    bound = 1.0 / jnp.sqrt(jnp.float32(fan_in))
    w = jax.random.uniform(kw, (fan_in, fan_out), jnp.float32, -bound, bound)
    b = jax.random.uniform(kb, (fan_out,), jnp.float32, -bound, bound)
    return w, b


def init_params(key, nb_links, K, D, nb_hidden, nb_dim_hidden, nb_z):
    params = {"enc": [], "dec": []}
    enc_dims = [nb_links] + [nb_dim_hidden] * nb_hidden + [nb_z * D]
    dec_dims = [nb_z * D] + [nb_dim_hidden] * nb_hidden + [nb_links]
    n_layers = len(enc_dims) - 1 + len(dec_dims) - 1
    keys = jax.random.split(key, n_layers + 1)
    ki = 0
    for i in range(len(enc_dims) - 1):
        params["enc"].append(_init_linear(keys[ki], enc_dims[i], enc_dims[i + 1]))
        ki += 1
    for i in range(len(dec_dims) - 1):
        params["dec"].append(_init_linear(keys[ki], dec_dims[i], dec_dims[i + 1]))
        ki += 1
    # codebook ~ U(-1/K, 1/K) like the PyTorch module
    params["emb"] = jax.random.uniform(
        keys[ki], (K, D), jnp.float32, -1.0 / K, 1.0 / K)
    return params


# ---------------------------------------------------------------------------
# Pack every parameter into one (rows, width) f32 slab (one DMA instead of ~14)
# and record static row offsets.  Piece starts are 8-sublane aligned; width is
# a multiple of 128 lanes.
# ---------------------------------------------------------------------------
def _build_param_slab(params, nb_z):
    enc, dec, emb = params["enc"], params["dec"], params["emb"]
    K, D = emb.shape
    ZD, ZK = nb_z * D, nb_z * K
    width = _round_up(max([ZK, ZD] + [w.shape[1] for w, _ in enc + dec]), 128)

    pieces, offs = [], []
    row = 0

    def add(p):
        nonlocal row
        row = _round_up(row, 8)
        offs.append(row)
        pieces.append(p.astype(jnp.float32))
        row += p.shape[0]
        return offs[-1]

    enc_meta = []
    for w, b in enc:
        off = add(jnp.concatenate([w, b.reshape(1, -1)], axis=0))   # weight rows + bias row
        enc_meta.append((off, w.shape[0], w.shape[1]))
    dec_meta = []
    for w, b in dec:
        off = add(jnp.concatenate([w, b.reshape(1, -1)], axis=0))
        dec_meta.append((off, w.shape[0], w.shape[1]))

    eye = jnp.eye(nb_z, dtype=jnp.float32)
    embT_off = add(jnp.kron(eye, emb.T))                              # (ZD, ZK) block-diag emb^T
    embbd_off = add(jnp.kron(eye, emb))                               # (ZK, ZD) block-diag emb
    embsq_off = add(jnp.tile(jnp.sum(emb * emb, axis=-1)[None, :], (1, nb_z)))  # (1, ZK)

    total = _round_up(row, 8)
    slab = jnp.zeros((total, width), jnp.float32)
    for off, p in zip(offs, pieces):
        slab = slab.at[off:off + p.shape[0], :p.shape[1]].set(p)

    meta = dict(enc=tuple(enc_meta), dec=tuple(dec_meta),
                embT=embT_off, embbd=embbd_off, embsq=embsq_off)
    return slab, meta


# ---------------------------------------------------------------------------
# Forward pass: one fused pallas_call over a batch-parallel grid.
# ---------------------------------------------------------------------------
@functools.partial(jax.jit, static_argnames=("nb_z",))
def vqvae_forward(params, x, nb_z):
    B, nb_links = x.shape
    K, D = params["emb"].shape
    ZD = nb_z * D

    # NOTE: in a training loop the slab would be packed once outside the step.
    slab, meta = _build_param_slab(params, nb_z)
    out_cols = _round_up(2 * ZD + nb_links + nb_z, 128)

    tb = 8 if (B % 8 == 0) else B          # 8-sublane-aligned batch tile
    grid = (B // tb,)

    kernel = functools.partial(
        _fused_vqvae_kernel,
        enc_meta=meta["enc"], dec_meta=meta["dec"],
        embT_off=meta["embT"], embbd_off=meta["embbd"], embsq_off=meta["embsq"],
        nb_z=nb_z, K=K, D=D, nb_links=nb_links, out_cols=out_cols)

    out = pl.pallas_call(
        kernel,
        out_shape=jax.ShapeDtypeStruct((B, out_cols), jnp.float32),
        grid=grid,
        in_specs=[
            pl.BlockSpec((tb, nb_links), lambda i: (i, 0)),
            pl.BlockSpec(slab.shape, lambda i: (0, 0)),   # same block every step
        ],
        out_specs=pl.BlockSpec((tb, out_cols), lambda i: (i, 0)),
        compiler_params=pltpu.CompilerParams(
            dimension_semantics=("parallel",)),            # both TCs on v7x
    )(x, slab)

    # ---- split the lane-dense output slab (wrapper-side glue) -------------
    z_e = out[:, 0:ZD].reshape(B, nb_z, D)
    z_q = out[:, ZD:2 * ZD].reshape(B, nb_z, D)
    x_hat = out[:, 2 * ZD:2 * ZD + nb_links]
    indices = out[:, 2 * ZD + nb_links:2 * ZD + nb_links + nb_z].astype(jnp.int32)
    # Straight-through forward value (identical to PyTorch's z_e + (z_q-z_e).detach()).
    z_q_st = z_e + (z_q - z_e)
    return z_e, z_q_st, z_q, x_hat, indices


# ---------------------------------------------------------------------------
if __name__ == "__main__":
    nb_links = 16
    K = 32
    D = 8
    nb_hidden = 2
    nb_dim_hidden = 32
    nb_z = 4
    B = 16

    key = jax.random.PRNGKey(0)
    kparams, kx = jax.random.split(key)
    params = init_params(kparams, nb_links, K, D, nb_hidden, nb_dim_hidden, nb_z)
    x = jax.random.normal(kx, (B, nb_links), jnp.float32)

    z_e, z_q_st, z_q, x_hat, indices = vqvae_forward(params, x, nb_z)
    jax.block_until_ready((z_e, z_q_st, z_q, x_hat, indices))

    # shape / dtype contract
    assert z_e.shape == (B, nb_z, D)
    assert z_q_st.shape == (B, nb_z, D)
    assert z_q.shape == (B, nb_z, D)
    assert x_hat.shape == (B, nb_links)
    assert indices.shape == (B, nb_z)
    assert indices.dtype == jnp.int32
    assert bool(jnp.all((indices >= 0) & (indices < K)))

    # lightweight plain-JAX reference checks (loose tolerances: MXU rounding)
    enc_p, dec_p, emb_p = params["enc"], params["dec"], params["emb"]
    h = x
    for i, (w, b) in enumerate(enc_p):
        h = h @ w + b
        if i < len(enc_p) - 1:
            h = jnp.maximum(h, 0.0)
    ze_ref = h.reshape(B, nb_z, D)
    assert bool(jnp.allclose(z_e, ze_ref, atol=1e-2, rtol=1e-2))
    # each quantized vector must be the codebook row named by `indices`
    assert bool(jnp.allclose(z_q, emb_p[indices], atol=1e-2, rtol=1e-2))
    # decoder check driven by the kernel's own z_q (tie-break independent)
    h = z_q_st.reshape(B, nb_z * D)
    for i, (w, b) in enumerate(dec_p):
        h = h @ w + b
        if i < len(dec_p) - 1:
            h = jnp.maximum(h, 0.0)
    assert bool(jnp.allclose(x_hat, h, atol=1e-2, rtol=1e-2))

    print("KERNEL_OK")
</pallas_src>

<mosaic_0001>
module attributes {stable_mosaic.version = 11 : i64} {
  func.func @_fused_vqvae_kernel(%arg0: i32, %arg1: memref<8x16xf32, #tpu.memory_space<vmem>>, %arg2: memref<392x128xf32, #tpu.memory_space<vmem>>, %arg3: memref<8x128xf32, #tpu.memory_space<vmem>>) attributes {dimension_semantics = [#tpu.dimension_semantics<parallel>], iteration_bounds = array<i64: 2>, scalar_prefetch = 0 : i64, scratch_operands = 0 : i64, tpu.core_type = #tpu.core_type<tc>, window_params = [{transform_indices = @transform_0, window_bounds = array<i64: 8, 16>}, {pipeline_mode = #tpu.pipeline_mode<synchronous>, transform_indices = @transform_1, window_bounds = array<i64: 392, 128>}, {transform_indices = @transform_2, window_bounds = array<i64: 8, 128>}]} {
    %c0 = arith.constant 0 : index
    %c0_0 = arith.constant 0 : index
    %0 = vector.load %arg1[%c0, %c0_0] : memref<8x16xf32, #tpu.memory_space<vmem>>, vector<8x16xf32>
    %c0_1 = arith.constant 0 : index
    %c0_2 = arith.constant 0 : index
    %1 = vector.load %arg2[%c0_1, %c0_2] : memref<392x128xf32, #tpu.memory_space<vmem>>, vector<16x32xf32>
    %c16 = arith.constant 16 : index
    %c0_3 = arith.constant 0 : index
    %2 = vector.load %arg2[%c16, %c0_3] : memref<392x128xf32, #tpu.memory_space<vmem>>, vector<1x32xf32>
    %cst = arith.constant dense<0.000000e+00> : vector<8x32xf32>
    %3 = tpu.matmul %0, %1, %cst {dimension_numbers = #tpu.dot_dimension_numbers<[1], [0], [0], [1], [0, 0, 1, 1], [], []>} : vector<8x16xf32>, vector<16x32xf32>, vector<8x32xf32> -> vector<8x32xf32>
    %4 = vector.broadcast %2 : vector<1x32xf32> to vector<8x32xf32>
    %5 = arith.addf %3, %4 : vector<8x32xf32>
    %cst_4 = arith.constant 0.000000e+00 : f32
    %6 = vector.broadcast %cst_4 : f32 to vector<8x32xf32>
    %7 = arith.maximumf %5, %6 : vector<8x32xf32>
    %c24 = arith.constant 24 : index
    %c0_5 = arith.constant 0 : index
    %8 = vector.load %arg2[%c24, %c0_5] : memref<392x128xf32, #tpu.memory_space<vmem>>, vector<32x32xf32>
    %c56 = arith.constant 56 : index
    %c0_6 = arith.constant 0 : index
    %9 = vector.load %arg2[%c56, %c0_6] : memref<392x128xf32, #tpu.memory_space<vmem>>, vector<1x32xf32>
    %cst_7 = arith.constant dense<0.000000e+00> : vector<8x32xf32>
    %10 = tpu.matmul %7, %8, %cst_7 {dimension_numbers = #tpu.dot_dimension_numbers<[1], [0], [0], [1], [0, 0, 1, 1], [], []>} : vector<8x32xf32>, vector<32x32xf32>, vector<8x32xf32> -> vector<8x32xf32>
    %11 = vector.broadcast %9 : vector<1x32xf32> to vector<8x32xf32>
    %12 = arith.addf %10, %11 : vector<8x32xf32>
    %cst_8 = arith.constant 0.000000e+00 : f32
    %13 = vector.broadcast %cst_8 : f32 to vector<8x32xf32>
    %14 = arith.maximumf %12, %13 : vector<8x32xf32>
    %c64 = arith.constant 64 : index
    %c0_9 = arith.constant 0 : index
    %15 = vector.load %arg2[%c64, %c0_9] : memref<392x128xf32, #tpu.memory_space<vmem>>, vector<32x32xf32>
    %c96 = arith.constant 96 : index
    %c0_10 = arith.constant 0 : index
    %16 = vector.load %arg2[%c96, %c0_10] : memref<392x128xf32, #tpu.memory_space<vmem>>, vector<1x32xf32>
    %cst_11 = arith.constant dense<0.000000e+00> : vector<8x32xf32>
    %17 = tpu.matmul %14, %15, %cst_11 {dimension_numbers = #tpu.dot_dimension_numbers<[1], [0], [0], [1], [0, 0, 1, 1], [], []>} : vector<8x32xf32>, vector<32x32xf32>, vector<8x32xf32> -> vector<8x32xf32>
    %18 = vector.broadcast %16 : vector<1x32xf32> to vector<8x32xf32>
    %19 = arith.addf %17, %18 : vector<8x32xf32>
    %c224 = arith.constant 224 : index
    %c0_12 = arith.constant 0 : index
    %20 = vector.load %arg2[%c224, %c0_12] : memref<392x128xf32, #tpu.memory_space<vmem>>, vector<32x128xf32>
    %cst_13 = arith.constant dense<0.000000e+00> : vector<8x128xf32>
    %21 = tpu.matmul %19, %20, %cst_13 {dimension_numbers = #tpu.dot_dimension_numbers<[1], [0], [0], [1], [0, 0, 1, 1], [], []>} : vector<8x32xf32>, vector<32x128xf32>, vector<8x128xf32> -> vector<8x128xf32>
    %c384 = arith.constant 384 : index
    %c0_14 = arith.constant 0 : index
    %22 = vector.load %arg2[%c384, %c0_14] : memref<392x128xf32, #tpu.memory_space<vmem>>, vector<1x128xf32>
    %cst_15 = arith.constant 2.000000e+00 : f32
    %23 = vector.broadcast %cst_15 : f32 to vector<8x128xf32>
    %24 = arith.mulf %23, %21 : vector<8x128xf32>
    %25 = vector.broadcast %22 : vector<1x128xf32> to vector<8x128xf32>
    %26 = arith.subf %25, %24 : vector<8x128xf32>
    %27 = vector.shape_cast %26 : vector<8x128xf32> to vector<8x4x32xf32>
    %28 = tpu.iota {dimensions = array<i32: 2>} : vector<8x4x32xi32>
    %cst_16 = arith.constant dense<0x7F800000> : vector<8x4xf32>
    %29 = vector.multi_reduction <minimumf>, %27, %cst_16 [2] : vector<8x4x32xf32> to vector<8x4xf32>
    %30 = vector.shape_cast %29 : vector<8x4xf32> to vector<8x4x1xf32>
    %31 = vector.broadcast %30 : vector<8x4x1xf32> to vector<8x4x32xf32>
    %32 = arith.cmpf ole, %27, %31 : vector<8x4x32xf32>
    %c32_i32 = arith.constant 32 : i32
    %33 = vector.broadcast %c32_i32 : i32 to vector<8x4x32xi32>
    %34 = arith.select %32, %28, %33 : vector<8x4x32xi1>, vector<8x4x32xi32>
    %cst_17 = arith.constant dense<2147483647> : vector<8x4xi32>
    %35 = vector.multi_reduction <minsi>, %34, %cst_17 [2] : vector<8x4x32xi32> to vector<8x4xi32>
    %36 = vector.shape_cast %35 : vector<8x4xi32> to vector<8x4x1xi32>
    %37 = vector.broadcast %36 : vector<8x4x1xi32> to vector<8x4x32xi32>
    %38 = arith.cmpi eq, %28, %37 : vector<8x4x32xi32>
    %39 = arith.extui %38 : vector<8x4x32xi1> to vector<8x4x32xi32>
    %40 = arith.sitofp %39 : vector<8x4x32xi32> to vector<8x4x32xf32>
    %41 = vector.shape_cast %40 : vector<8x4x32xf32> to vector<8x128xf32>
    %c256 = arith.constant 256 : index
    %c0_18 = arith.constant 0 : index
    %42 = vector.load %arg2[%c256, %c0_18] : memref<392x128xf32, #tpu.memory_space<vmem>>, vector<128x32xf32>
    %cst_19 = arith.constant dense<0.000000e+00> : vector<8x32xf32>
    %43 = tpu.matmul %41, %42, %cst_19 {dimension_numbers = #tpu.dot_dimension_numbers<[1], [0], [0], [1], [0, 0, 1, 1], [], []>} : vector<8x128xf32>, vector<128x32xf32>, vector<8x32xf32> -> vector<8x32xf32>
    %c104 = arith.constant 104 : index
    %c0_20 = arith.constant 0 : index
    %44 = vector.load %arg2[%c104, %c0_20] : memref<392x128xf32, #tpu.memory_space<vmem>>, vector<32x32xf32>
    %c136 = arith.constant 136 : index
    %c0_21 = arith.constant 0 : index
    %45 = vector.load %arg2[%c136, %c0_21] : memref<392x128xf32, #tpu.memory_space<vmem>>, vector<1x32xf32>
    %cst_22 = arith.constant dense<0.000000e+00> : vector<8x32xf32>
    %46 = tpu.matmul %43, %44, %cst_22 {dimension_numbers = #tpu.dot_dimension_numbers<[1], [0], [0], [1], [0, 0, 1, 1], [], []>} : vector<8x32xf32>, vector<32x32xf32>, vector<8x32xf32> -> vector<8x32xf32>
    %47 = vector.broadcast %45 : vector<1x32xf32> to vector<8x32xf32>
    %48 = arith.addf %46, %47 : vector<8x32xf32>
    %cst_23 = arith.constant 0.000000e+00 : f32
    %49 = vector.broadcast %cst_23 : f32 to vector<8x32xf32>
    %50 = arith.maximumf %48, %49 : vector<8x32xf32>
    %c144 = arith.constant 144 : index
    %c0_24 = arith.constant 0 : index
    %51 = vector.load %arg2[%c144, %c0_24] : memref<392x128xf32, #tpu.memory_space<vmem>>, vector<32x32xf32>
    %c176 = arith.constant 176 : index
    %c0_25 = arith.constant 0 : index
    %52 = vector.load %arg2[%c176, %c0_25] : memref<392x128xf32, #tpu.memory_space<vmem>>, vector<1x32xf32>
    %cst_26 = arith.constant dense<0.000000e+00> : vector<8x32xf32>
    %53 = tpu.matmul %50, %51, %cst_26 {dimension_numbers = #tpu.dot_dimension_numbers<[1], [0], [0], [1], [0, 0, 1, 1], [], []>} : vector<8x32xf32>, vector<32x32xf32>, vector<8x32xf32> -> vector<8x32xf32>
    %54 = vector.broadcast %52 : vector<1x32xf32> to vector<8x32xf32>
    %55 = arith.addf %53, %54 : vector<8x32xf32>
    %cst_27 = arith.constant 0.000000e+00 : f32
    %56 = vector.broadcast %cst_27 : f32 to vector<8x32xf32>
    %57 = arith.maximumf %55, %56 : vector<8x32xf32>
    %c184 = arith.constant 184 : index
    %c0_28 = arith.constant 0 : index
    %58 = vector.load %arg2[%c184, %c0_28] : memref<392x128xf32, #tpu.memory_space<vmem>>, vector<32x16xf32>
    %c216 = arith.constant 216 : index
    %c0_29 = arith.constant 0 : index
    %59 = vector.load %arg2[%c216, %c0_29] : memref<392x128xf32, #tpu.memory_space<vmem>>, vector<1x16xf32>
    %cst_30 = arith.constant dense<0.000000e+00> : vector<8x16xf32>
    %60 = tpu.matmul %57, %58, %cst_30 {dimension_numbers = #tpu.dot_dimension_numbers<[1], [0], [0], [1], [0, 0, 1, 1], [], []>} : vector<8x32xf32>, vector<32x16xf32>, vector<8x16xf32> -> vector<8x16xf32>
    %61 = vector.broadcast %59 : vector<1x16xf32> to vector<8x16xf32>
    %62 = arith.addf %60, %61 : vector<8x16xf32>
    %63 = arith.sitofp %36 : vector<8x4x1xi32> to vector<8x4x1xf32>
    %64 = vector.shape_cast %63 : vector<8x4x1xf32> to vector<8x4xf32>
    %cst_31 = arith.constant 0.000000e+00 : f32
    %65 = vector.broadcast %cst_31 : f32 to vector<8x44xf32>
    %66 = tpu.concatenate %19, %43, %62, %64, %65 in 1 : vector<8x32xf32>, vector<8x32xf32>, vector<8x16xf32>, vector<8x4xf32>, vector<8x44xf32> -> vector<8x128xf32>
    %c0_32 = arith.constant 0 : index
    %c0_33 = arith.constant 0 : index
    %67 = vector.load %arg3[%c0_32, %c0_33] : memref<8x128xf32, #tpu.memory_space<vmem>>, vector<8x128xf32>
    tpu.vector_store %arg3[%c0_32, %c0_33], %66 {strides = array<i32>} : memref<8x128xf32, #tpu.memory_space<vmem>>, vector<8x128xf32>,
    return
  }
  func.func @transform_0(%arg0: i32) -> (i32, i32) {
    %c0_i32 = arith.constant 0 : i32
    %c0_i32_0 = arith.constant 0 : i32
    return %arg0, %c0_i32 : i32, i32
  }
  func.func @transform_1(%arg0: i32) -> (i32, i32) {
    %c0_i32 = arith.constant 0 : i32
    %c0_i32_0 = arith.constant 0 : i32
    %c0_i32_1 = arith.constant 0 : i32
    return %c0_i32, %c0_i32_0 : i32, i32
  }
  func.func @transform_2(%arg0: i32) -> (i32, i32) {
    %c0_i32 = arith.constant 0 : i32
    %c0_i32_0 = arith.constant 0 : i32
    return %arg0, %c0_i32 : i32, i32
  }
}

</mosaic_0001>

<llo_original>
// kernel: vqvae_forward.1
$region0: #{vqvae_forward.1}
  #allocation0 [shape = 'u32[]', space=smem, size = 0x4, offset = 0x4, fixed_abs, tag = 'smem constant byte address 0x4 - core index']
  #allocation1 [shape = 'u32[144,128]{1,0:T(1,128)}', space=vmem, size = 0x12000, scoped, tag = 'internal scratch']
  %s0 = inlined_call_operand.vmem [shape: f32[16,16], index: 0, kind: input, shape index: {}]
  %s1 = inlined_call_operand.vmem [shape: f32[392,128], index: 1, kind: input, shape index: {}]
  %s2 = inlined_call_operand.vmem [shape: f32[16,128], index: 2, kind: output, shape index: {}]
  %s3 = sld [smem:[#allocation0]]
  $region41: #{vqvae_forward.1} parent=0
    _
  %s5 = ssub.s32 1, %s3
  %s6 = scalar_select 0, %s5, %s3
  loop: start=0, step=1, limit=4
  $region2: #{vqvae_forward.1} parent=0 // loop_pre_header
    _
  $region3: #{vqvae_forward.1} parent=0 // loop_header
    %s8 = sphi 0, %s12
    %p9 = scmp.ge.s32.totalorder %s8, 4
    %s18 = sphi 0, %s20
    %s21 = sphi 0, %s18
    %s22 = sphi 0, %s21
    %s38 = sphi 0, %s22
    %s42 = sphi 0, %s42
    %s44 = sphi 0, %s42
    %s45 = sphi 0, %s44
    %s59 = sphi 0, %s45
    %s65 = sphi 0, %s67
    %s68 = sphi 0, %s65
    %s69 = sphi 0, %s68
    %s85 = sphi 0, %s69
  $region4: #{vqvae_forward.1} parent=0 // loop_header_branch
    %11 = sbr.rel (%p9) target = $region8
  $region5: #{vqvae_forward.1} parent=0 // loop_body
    %s13 = ssub.s32 %s8, 1
    %s14 = ssub.s32 %s8, 2
    %s15 = sadd.s32 %s8, 1
    %s16 = ssub.s32 %s8, %s15
    %p17 = scmp.eq.s32.totalorder %s16, 0
    %s19 = sadd.s32 %s18, 1
    %s20 = scalar_select %p17, %s18, %s19
    %p23 = pneg %p17
    %p24 = scmp.eq.s32.totalorder %s8, 1
    %p25 = por %p23, %p24
    %p26 = scmp.ne.s32.totalorder %s18, %s21
    %p27 = scmp.eq.s32.totalorder %s8, 0
    %p28 = por %p26, %p27
    %p29 = scmp.ne.s32.totalorder %s18, %s21
    %p30 = scmp.eq.s32.totalorder %s13, 1
    %p31 = por %p29, %p30
    %p32 = scmp.ne.s32.totalorder %s21, %s22
    %p33 = scmp.eq.s32.totalorder %s13, 0
    %p34 = por %p32, %p33
    %p35 = scmp.ne.s32.totalorder %s21, %s22
    %p36 = scmp.eq.s32.totalorder %s14, 1
    %p37 = por %p35, %p36
    %p39 = scmp.ne.s32.totalorder %s22, %s38
    %p40 = scmp.eq.s32.totalorder %s14, 0
    %p41 = por %p39, %p40
    %s43 = sadd.s32 %s42, 1
    %p46 = scmp.eq.s32.totalorder %s8, 1
    %p47 = scmp.ne.s32.totalorder %s42, %s44
    %p48 = scmp.eq.s32.totalorder %s8, 0
    %p49 = por %p47, %p48
    %p50 = scmp.ne.s32.totalorder %s42, %s44
    %p51 = scmp.eq.s32.totalorder %s13, 1
    %p52 = por %p50, %p51
    %p53 = scmp.ne.s32.totalorder %s44, %s45
    %p54 = scmp.eq.s32.totalorder %s13, 0
    %p55 = por %p53, %p54
    %p56 = scmp.ne.s32.totalorder %s44, %s45
    %p57 = scmp.eq.s32.totalorder %s14, 1
    %p58 = por %p56, %p57
    %p60 = scmp.ne.s32.totalorder %s45, %s59
    %p61 = scmp.eq.s32.totalorder %s14, 0
    %p62 = por %p60, %p61
    %s63 = ssub.s32 %s8, %s15
    %p64 = scmp.eq.s32.totalorder %s63, 0
    %s66 = sadd.s32 %s65, 1
    %s67 = scalar_select %p64, %s65, %s66
    %p70 = pneg %p64
    %p71 = scmp.eq.s32.totalorder %s8, 1
    %p72 = por %p70, %p71
    %p73 = scmp.ne.s32.totalorder %s65, %s68
    %p74 = scmp.eq.s32.totalorder %s8, 0
    %p75 = por %p73, %p74
    %p76 = scmp.ne.s32.totalorder %s65, %s68
    %p77 = scmp.eq.s32.totalorder %s13, 1
    %p78 = por %p76, %p77
    %p79 = scmp.ne.s32.totalorder %s68, %s69
    %p80 = scmp.eq.s32.totalorder %s13, 0
    %p81 = por %p79, %p80
    %p82 = scmp.ne.s32.totalorder %s68, %s69
    %p83 = scmp.eq.s32.totalorder %s14, 1
    %p84 = por %p82, %p83
    %p86 = scmp.ne.s32.totalorder %s69, %s85
    %p87 = scmp.eq.s32.totalorder %s14, 0
    %p88 = por %p86, %p87
    %p89 = scmp.le.s32.totalorder 1, %s8
    %p90 = scmp.lt.s32.totalorder %s8, 3
    %p91 = pnand %p89, %p90
    %p92 = pneg %p91
    // Predicated region
    $region9: #{vqvae_forward.1} parent=5 // pred_check
      _
    $region10: #{vqvae_forward.1} parent=5 // pred_check_branch
      %94 = sbr.rel (%p91) target = $region12
    $region11: #{vqvae_forward.1} parent=5 // pred_region
      %s95 = ssub.s32 %s8, 1
      // Predicated region
      $region13: #{vqvae_forward.1} parent=11 // pred_check
        %p96 = pneg %p55
      $region14: #{vqvae_forward.1} parent=11 // pred_check_branch
        %98 = sbr.rel (%p96) target = $region16
      $region15: #{vqvae_forward.1} parent=11 // pred_region
        _
      $region16: #{vqvae_forward.1} parent=11 // pred_fallthru
        _
    $region12: #{vqvae_forward.1} parent=5 // pred_fallthru
      _
    %p99 = scmp.lt.s32.totalorder %s8, 2
    // Predicated region
    $region17: #{vqvae_forward.1} parent=5 // pred_check
      %p100 = pneg %p99
    $region18: #{vqvae_forward.1} parent=5 // pred_check_branch
      %102 = sbr.rel (%p100) target = $region20
    $region19: #{vqvae_forward.1} parent=5 // pred_region
      // Predicated region
      $region21: #{vqvae_forward.1} parent=19 // pred_check
        %p103 = pneg %p28
      $region22: #{vqvae_forward.1} parent=19 // pred_check_branch
        %105 = sbr.rel (%p103) target = $region24
      $region23: #{vqvae_forward.1} parent=19 // pred_region
        %p106 = scmp.lt.s32.totalorder %s8, 1
        %s107 = scalar_select %p106, %s8, 1
        %s108 = smul.addr %s107, 8
        %s109 = scalar_lea.vmem %s0, %s108
      $region24: #{vqvae_forward.1} parent=19 // pred_fallthru
        _
    $region20: #{vqvae_forward.1} parent=5 // pred_fallthru
      _
    %p110 = scmp.le.s32.totalorder 1, %s8
    %p111 = scmp.lt.s32.totalorder %s8, 3
    %p112 = pnand %p110, %p111
    %p113 = pneg %p112
    // Predicated region
    $region25: #{vqvae_forward.1} parent=5 // pred_check
      _
    $region26: #{vqvae_forward.1} parent=5 // pred_check_branch
      %115 = sbr.rel (%p112) target = $region28
    $region27: #{vqvae_forward.1} parent=5 // pred_region
      %s116 = ssub.s32 %s8, 1
      %p117 = scmp.lt.s32.totalorder %s13, 1
      %s118 = scalar_select %p117, %s13, 1
      %s119 = smul.addr %s118, 8
      %s120 = scalar_lea.vmem %s0, %s119
      %p121 = pneg %p34
      %p122 = pneg %p31
      %p123 = pneg %p55
      %p124 = pneg %p52
      %p125 = pneg %p81
      %p126 = pneg %p78
      %p127 = scmp.lt.s32.totalorder %s13, 1
      %s128 = scalar_select %p127, %s13, 1
      %s129 = smul.addr %s128, 8
      %s130 = scalar_lea.vmem %s2, %s129
      %p131 = scmp.lt.s32.totalorder %s13, 1
      %s132 = scalar_select %p131, %s13, 1
      %s133 = smul.addr %s132, 8
      %s134 = scalar_lea.vmem %s0, %s133
      %p135 = scmp.lt.s32.totalorder %s13, 1
      %s136 = scalar_select %p135, %s13, 1
      %s137 = smul.addr %s136, 8
      %s138 = scalar_lea.vmem %s2, %s137
      %v139 = vld [vmem:[%s134] sm:$0xff]
      %v140 = vld [vmem:[%s1] sm:$0xff]
      %v141 = vld [vmem:[%s1 + $0x8] sm:$0xff]
      %v142 = vld [vmem:[%s1 + $0x10] sm:$0x1]
      %v143 = vlaneseq
      %v144 = vshrl.u32 %v143, 7
      %v145 = vsub.s32 0, %v144
      %v146 = vrot.slane %v142, %v145
      %vm147 = vcmask 130048
      %v149 = vsel %vm147, %v139, 0
      %151 = vmatprep.subr.mxu0 0.0
      %152 = vmatpush1.msra.mxu0 %v140
      %153 = vmatprep.subr.mxu0 0.0
      %154 = vmatpush1.msra.mxu0 %v141
      %155 = vmatprep.subr.mxu0 0.0
      %156 = vmatpush1.msra.mxu0 0.0
      %157 = vmatprep.subr.mxu0 0.0
      %158 = vmatpush1.msra.mxu0 0.0
      %159 = vmatprep.subr.mxu0 0.0
      %160 = vmatpush1.msra.mxu0 0.0
      %161 = vmatprep.subr.mxu0 0.0
      %162 = vmatpush1.msra.mxu0 0.0
      %163 = vmatprep.subr.mxu0 0.0
      %164 = vmatpush1.msra.mxu0 0.0
      %165 = vmatprep.subr.mxu0 0.0
      %166 = vmatpush1.msra.mxu0 0.0
      %167 = vmatprep.subr.mxu0 0.0
      %168 = vmatpush1.msra.mxu0 0.0
      %169 = vmatprep.subr.mxu0 0.0
      %170 = vmatpush1.msra.mxu0 0.0
      %171 = vmatprep.subr.mxu0 0.0
      %172 = vmatpush1.msra.mxu0 0.0
      %173 = vmatprep.subr.mxu0 0.0
      %174 = vmatpush1.msra.mxu0 0.0
      %175 = vmatprep.subr.mxu0 0.0
      %176 = vmatpush1.msra.mxu0 0.0
      %177 = vmatprep.subr.mxu0 0.0
      %178 = vmatpush1.msra.mxu0 0.0
      %179 = vmatprep.subr.mxu0 0.0
      %180 = vmatpush1.msra.mxu0 0.0
      %181 = vmatprep.subr.mxu0 0.0
      %182 = vmatpush1.msra.mxu0 0.0
      %183 = vmatprep.subr.mxu0 0.0
      %184 = vmatpush1.msra.mxu0 0.0
      %185 = vmatprep.subr.mxu0 0.0
      %186 = vmatpush1.msra.mxu0 0.0
      %187 = vmatprep.subr.mxu0 0.0
      %188 = vmatpush1.msra.mxu0 0.0
      %189 = vmatprep.subr.mxu0 0.0
      %190 = vmatpush1.msra.mxu0 0.0
      %191 = vmatprep.subr.mxu0 0.0
      %192 = vmatpush1.msra.mxu0 0.0
      %193 = vmatprep.subr.mxu0 0.0
      %194 = vmatpush1.msra.mxu0 0.0
      %195 = vmatprep.subr.mxu0 0.0
      %196 = vmatpush1.msra.mxu0 0.0
      %197 = vmatprep.subr.mxu0 0.0
      %198 = vmatpush1.msra.mxu0 0.0
      %199 = vmatprep.subr.mxu0 0.0
      %200 = vmatpush1.msra.mxu0 0.0
      %201 = vmatprep.subr.mxu0 0.0
      %202 = vmatpush1.msra.mxu0 0.0
      %203 = vmatprep.subr.mxu0 0.0
      %204 = vmatpush1.msra.mxu0 0.0
      %205 = vmatprep.subr.mxu0 0.0
      %206 = vmatpush1.msra.mxu0 0.0
      %207 = vmatprep.subr.mxu0 0.0
      %208 = vmatpush1.msra.mxu0 0.0
      %209 = vmatprep.subr.mxu0 0.0
      %210 = vmatpush1.msra.mxu0 0.0
      %211 = vmatprep.subr.mxu0 0.0
      %212 = vmatpush1.msra.mxu0 0.0
      %213 = vmatprep.subr.mxu0 0.0
      %214 = vmatpush1.msra.mxu0 0.0
      %215 = vmatprep.mubr.f32.mxu0 0.0
      %216 = vmatmul.mubr.f32.gmra.mrb[0].mxu0 %v149
      %v217 = vpop.f32.mrb[0].mxu0
      %v218 = vadd.f32 %v146, %v217
      %v219 = vpop.f32.mrb[0].mxu0
      %220 = vdwg.mxu0
      %v221 = vmax.f32 %v218, 0.0
      %v222 = vld [vmem:[%s1 + $0x18] sm:$0xff]
      %v223 = vld [vmem:[%s1 + $0x20] sm:$0xff]
      %v224 = vld [vmem:[%s1 + $0x28] sm:$0xff]
      %v225 = vld [vmem:[%s1 + $0x30] sm:$0xff]
      %v226 = vld [vmem:[%s1 + $0x38] sm:$0x1]
      %v227 = vlaneseq
      %v228 = vshrl.u32 %v227, 7
      %v229 = vsub.s32 0, %v228
      %v230 = vrot.slane %v226, %v229
      %vm231 = vcmask 261120
      %v233 = vsel %vm231, %v221, 0
      %235 = vmatprep.subr.mxu0 0.0
      %236 = vmatpush1.msra.mxu0 %v222
      %237 = vmatprep.subr.mxu0 0.0
      %238 = vmatpush1.msra.mxu0 %v223
      %239 = vmatprep.subr.mxu0 0.0
      %240 = vmatpush1.msra.mxu0 %v224
      %241 = vmatprep.subr.mxu0 0.0
      %242 = vmatpush1.msra.mxu0 %v225
      %243 = vmatprep.subr.mxu0 0.0
      %244 = vmatpush1.msra.mxu0 0.0
      %245 = vmatprep.subr.mxu0 0.0
      %246 = vmatpush1.msra.mxu0 0.0
      %247 = vmatprep.subr.mxu0 0.0
      %248 = vmatpush1.msra.mxu0 0.0
      %249 = vmatprep.subr.mxu0 0.0
      %250 = vmatpush1.msra.mxu0 0.0
      %251 = vmatprep.subr.mxu0 0.0
      %252 = vmatpush1.msra.mxu0 0.0
      %253 = vmatprep.subr.mxu0 0.0
      %254 = vmatpush1.msra.mxu0 0.0
      %255 = vmatprep.subr.mxu0 0.0
      %256 = vmatpush1.msra.mxu0 0.0
      %257 = vmatprep.subr.mxu0 0.0
      %258 = vmatpush1.msra.mxu0 0.0
      %259 = vmatprep.subr.mxu0 0.0
      %260 = vmatpush1.msra.mxu0 0.0
      %261 = vmatprep.subr.mxu0 0.0
      %262 = vmatpush1.msra.mxu0 0.0
      %263 = vmatprep.subr.mxu0 0.0
      %264 = vmatpush1.msra.mxu0 0.0
      %265 = vmatprep.subr.mxu0 0.0
      %266 = vmatpush1.msra.mxu0 0.0
      %267 = vmatprep.subr.mxu0 0.0
      %268 = vmatpush1.msra.mxu0 0.0
      %269 = vmatprep.subr.mxu0 0.0
      %270 = vmatpush1.msra.mxu0 0.0
      %271 = vmatprep.subr.mxu0 0.0
      %272 = vmatpush1.msra.mxu0 0.0
      %273 = vmatprep.subr.mxu0 0.0
      %274 = vmatpush1.msra.mxu0 0.0
      %275 = vmatprep.subr.mxu0 0.0
      %276 = vmatpush1.msra.mxu0 0.0
      %277 = vmatprep.subr.mxu0 0.0
      %278 = vmatpush1.msra.mxu0 0.0
      %279 = vmatprep.subr.mxu0 0.0
      %280 = vmatpush1.msra.mxu0 0.0
      %281 = vmatprep.subr.mxu0 0.0
      %282 = vmatpush1.msra.mxu0 0.0
      %283 = vmatprep.subr.mxu0 0.0
      %284 = vmatpush1.msra.mxu0 0.0
      %285 = vmatprep.subr.mxu0 0.0
      %286 = vmatpush1.msra.mxu0 0.0
      %287 = vmatprep.subr.mxu0 0.0
      %288 = vmatpush1.msra.mxu0 0.0
      %289 = vmatprep.subr.mxu0 0.0
      %290 = vmatpush1.msra.mxu0 0.0
      %291 = vmatprep.subr.mxu0 0.0
      %292 = vmatpush1.msra.mxu0 0.0
      %293 = vmatprep.subr.mxu0 0.0
      %294 = vmatpush1.msra.mxu0 0.0
      %295 = vmatprep.subr.mxu0 0.0
      %296 = vmatpush1.msra.mxu0 0.0
      %297 = vmatprep.subr.mxu0 0.0
      %298 = vmatpush1.msra.mxu0 0.0
      %299 = vmatprep.mubr.f32.mxu0 0.0
      %300 = vmatmul.mubr.f32.gmra.mrb[0].mxu0 %v233
      %v301 = vpop.f32.mrb[0].mxu0
      %v302 = vadd.f32 %v230, %v301
      %v303 = vpop.f32.mrb[0].mxu0
      %304 = vdwg.mxu0
      %v305 = vmax.f32 %v302, 0.0
      %v306 = vld [vmem:[%s1 + $0x40] sm:$0xff]
      %v307 = vld [vmem:[%s1 + $0x48] sm:$0xff]
      %v308 = vld [vmem:[%s1 + $0x50] sm:$0xff]
      %v309 = vld [vmem:[%s1 + $0x58] sm:$0xff]
      %v310 = vld [vmem:[%s1 + $0x60] sm:$0x1]
      %v311 = vlaneseq
      %v312 = vshrl.u32 %v311, 7
      %v313 = vsub.s32 0, %v312
      %v314 = vrot.slane %v310, %v313
      %v316 = vsel %vm231, %v305, 0
      %318 = vmatprep.subr.mxu0 0.0
      %319 = vmatpush1.msra.mxu0 %v306
      %320 = vmatprep.subr.mxu0 0.0
      %321 = vmatpush1.msra.mxu0 %v307
      %322 = vmatprep.subr.mxu0 0.0
      %323 = vmatpush1.msra.mxu0 %v308
      %324 = vmatprep.subr.mxu0 0.0
      %325 = vmatpush1.msra.mxu0 %v309
      %326 = vmatprep.subr.mxu0 0.0
      %327 = vmatpush1.msra.mxu0 0.0
      %328 = vmatprep.subr.mxu0 0.0
      %329 = vmatpush1.msra.mxu0 0.0
      %330 = vmatprep.subr.mxu0 0.0
      %331 = vmatpush1.msra.mxu0 0.0
      %332 = vmatprep.subr.mxu0 0.0
      %333 = vmatpush1.msra.mxu0 0.0
      %334 = vmatprep.subr.mxu0 0.0
      %335 = vmatpush1.msra.mxu0 0.0
      %336 = vmatprep.subr.mxu0 0.0
      %337 = vmatpush1.msra.mxu0 0.0
      %338 = vmatprep.subr.mxu0 0.0
      %339 = vmatpush1.msra.mxu0 0.0
      %340 = vmatprep.subr.mxu0 0.0
      %341 = vmatpush1.msra.mxu0 0.0
      %342 = vmatprep.subr.mxu0 0.0
      %343 = vmatpush1.msra.mxu0 0.0
      %344 = vmatprep.subr.mxu0 0.0
      %345 = vmatpush1.msra.mxu0 0.0
      %346 = vmatprep.subr.mxu0 0.0
      %347 = vmatpush1.msra.mxu0 0.0
      %348 = vmatprep.subr.mxu0 0.0
      %349 = vmatpush1.msra.mxu0 0.0
      %350 = vmatprep.subr.mxu0 0.0
      %351 = vmatpush1.msra.mxu0 0.0
      %352 = vmatprep.subr.mxu0 0.0
      %353 = vmatpush1.msra.mxu0 0.0
      %354 = vmatprep.subr.mxu0 0.0
      %355 = vmatpush1.msra.mxu0 0.0
      %356 = vmatprep.subr.mxu0 0.0
      %357 = vmatpush1.msra.mxu0 0.0
      %358 = vmatprep.subr.mxu0 0.0
      %359 = vmatpush1.msra.mxu0 0.0
      %360 = vmatprep.subr.mxu0 0.0
      %361 = vmatpush1.msra.mxu0 0.0
      %362 = vmatprep.subr.mxu0 0.0
      %363 = vmatpush1.msra.mxu0 0.0
      %364 = vmatprep.subr.mxu0 0.0
      %365 = vmatpush1.msra.mxu0 0.0
      %366 = vmatprep.subr.mxu0 0.0
      %367 = vmatpush1.msra.mxu0 0.0
      %368 = vmatprep.subr.mxu0 0.0
      %369 = vmatpush1.msra.mxu0 0.0
      %370 = vmatprep.subr.mxu0 0.0
      %371 = vmatpush1.msra.mxu0 0.0
      %372 = vmatprep.subr.mxu0 0.0
      %373 = vmatpush1.msra.mxu0 0.0
      %374 = vmatprep.subr.mxu0 0.0
      %375 = vmatpush1.msra.mxu0 0.0
      %376 = vmatprep.subr.mxu0 0.0
      %377 = vmatpush1.msra.mxu0 0.0
      %378 = vmatprep.subr.mxu0 0.0
      %379 = vmatpush1.msra.mxu0 0.0
      %380 = vmatprep.subr.mxu0 0.0
      %381 = vmatpush1.msra.mxu0 0.0
      %382 = vmatprep.mubr.f32.mxu0 0.0
      %383 = vmatmul.mubr.f32.gmra.mrb[0].mxu0 %v316
      %v384 = vpop.f32.mrb[0].mxu0
      %v385 = vadd.f32 %v314, %v384
      %v386 = vpop.f32.mrb[0].mxu0
      %387 = vdwg.mxu0
      %v388 = vld [vmem:[%s1 + $0xe0] sm:$0xff]
      %v389 = vld [vmem:[%s1 + $0xe8] sm:$0xff]
      %v390 = vld [vmem:[%s1 + $0xf0] sm:$0xff]
      %v391 = vld [vmem:[%s1 + $0xf8] sm:$0xff]
      %v393 = vsel %vm231, %v385, 0
      %395 = vmatprep.subr.mxu0 0.0
      %396 = vmatpush1.msra.mxu0 %v388
      %397 = vmatprep.subr.mxu0 0.0
      %398 = vmatpush1.msra.mxu0 %v389
      %399 = vmatprep.subr.mxu0 0.0
      %400 = vmatpush1.msra.mxu0 %v390
      %401 = vmatprep.subr.mxu0 0.0
      %402 = vmatpush1.msra.mxu0 %v391
      %403 = vmatprep.subr.mxu0 0.0
      %404 = vmatpush1.msra.mxu0 0.0
      %405 = vmatprep.subr.mxu0 0.0
      %406 = vmatpush1.msra.mxu0 0.0
      %407 = vmatprep.subr.mxu0 0.0
      %408 = vmatpush1.msra.mxu0 0.0
      %409 = vmatprep.subr.mxu0 0.0
      %410 = vmatpush1.msra.mxu0 0.0
      %411 = vmatprep.subr.mxu0 0.0
      %412 = vmatpush1.msra.mxu0 0.0
      %413 = vmatprep.subr.mxu0 0.0
      %414 = vmatpush1.msra.mxu0 0.0
      %415 = vmatprep.subr.mxu0 0.0
      %416 = vmatpush1.msra.mxu0 0.0
      %417 = vmatprep.subr.mxu0 0.0
      %418 = vmatpush1.msra.mxu0 0.0
      %419 = vmatprep.subr.mxu0 0.0
      %420 = vmatpush1.msra.mxu0 0.0
      %421 = vmatprep.subr.mxu0 0.0
      %422 = vmatpush1.msra.mxu0 0.0
      %423 = vmatprep.subr.mxu0 0.0
      %424 = vmatpush1.msra.mxu0 0.0
      %425 = vmatprep.subr.mxu0 0.0
      %426 = vmatpush1.msra.mxu0 0.0
      %427 = vmatprep.subr.mxu0 0.0
      %428 = vmatpush1.msra.mxu0 0.0
      %429 = vmatprep.subr.mxu0 0.0
      %430 = vmatpush1.msra.mxu0 0.0
      %431 = vmatprep.subr.mxu0 0.0
      %432 = vmatpush1.msra.mxu0 0.0
      %433 = vmatprep.subr.mxu0 0.0
      %434 = vmatpush1.msra.mxu0 0.0
      %435 = vmatprep.subr.mxu0 0.0
      %436 = vmatpush1.msra.mxu0 0.0
      %437 = vmatprep.subr.mxu0 0.0
      %438 = vmatpush1.msra.mxu0 0.0
      %439 = vmatprep.subr.mxu0 0.0
      %440 = vmatpush1.msra.mxu0 0.0
      %441 = vmatprep.subr.mxu0 0.0
      %442 = vmatpush1.msra.mxu0 0.0
      %443 = vmatprep.subr.mxu0 0.0
      %444 = vmatpush1.msra.mxu0 0.0
      %445 = vmatprep.subr.mxu0 0.0
      %446 = vmatpush1.msra.mxu0 0.0
      %447 = vmatprep.subr.mxu0 0.0
      %448 = vmatpush1.msra.mxu0 0.0
      %449 = vmatprep.subr.mxu0 0.0
      %450 = vmatpush1.msra.mxu0 0.0
      %451 = vmatprep.subr.mxu0 0.0
      %452 = vmatpush1.msra.mxu0 0.0
      %453 = vmatprep.subr.mxu0 0.0
      %454 = vmatpush1.msra.mxu0 0.0
      %455 = vmatprep.subr.mxu0 0.0
      %456 = vmatpush1.msra.mxu0 0.0
      %457 = vmatprep.subr.mxu0 0.0
      %458 = vmatpush1.msra.mxu0 0.0
      %459 = vmatprep.mubr.f32.mxu0 0.0
      %460 = vmatmul.mubr.f32.gmra.mrb[0].mxu0 %v393
      %v461 = vpop.f32.mrb[0].mxu0
      %v462 = vadd.f32 0.0, %v461
      %v463 = vpop.f32.mrb[0].mxu0
      %464 = vdwg.mxu0
      %v465 = vld [vmem:[%s1 + $0x180] sm:$0x1]
      %v466 = vmul.f32 %v462, 2.0
      %v467 = vlaneseq
      %v468 = vshrl.u32 %v467, 7
      %v469 = vsub.s32 0, %v468
      %v470 = vrot.slane %v465, %v469
      %v471 = vsub.f32 %v470, %v466
      %473 = vrot.lane.b32.xlu0 %v471, 96
      %v474 = vpop.permute.xlu0 %473
      %476 = vrot.lane.b32.xlu0 %v471, 64
      %v477 = vpop.permute.xlu0 %476
      %479 = vrot.lane.b32.xlu0 %v471, 32
      %v480 = vpop.permute.xlu0 %479
      %v482 = vcombine.low %v471, %v477
      %v483 = vcombine.high %v471, %v477
      %v485 = vunpack.c.l.s4 1983009808
      %v486 = vunpack.c.0.s8 %v485
      %v487 = vlaneseq
      %v488 = vshrl.u32 %v487, 7
      %v489 = vsub.s32 %v486, %v488
      %v490 = vrot.slane %v482, %v489
      %v492 = vunpack.c.l.s4 1983009808
      %v493 = vunpack.c.0.s8 %v492
      %v494 = vlaneseq
      %v495 = vshrl.u32 %v494, 7
      %v496 = vsub.s32 %v493, %v495
      %v497 = vrot.slane %v483, %v496
      %v498 = vcombine.low %v474, %v480
      %v499 = vcombine.high %v474, %v480
      %v501 = vunpack.c.l.s4 1983009808
      %v502 = vunpack.c.0.s8 %v501
      %v503 = vlaneseq
      %v504 = vshrl.u32 %v503, 7
      %v505 = vsub.s32 %v502, %v504
      %v506 = vrot.slane %v498, %v505
      %v508 = vunpack.c.l.s4 1983009808
      %v509 = vunpack.c.0.s8 %v508
      %v510 = vlaneseq
      %v511 = vshrl.u32 %v510, 7
      %v512 = vsub.s32 %v509, %v511
      %v513 = vrot.slane %v499, %v512
      %v514 = vcombine.low %v490, %v506
      %v515 = vcombine.high %v490, %v506
      %v517 = vunpack.c.l.s4 1934713408
      %v518 = vunpack.c.0.s8 %v517
      %v519 = vlaneseq
      %v520 = vshrl.u32 %v519, 7
      %v521 = vsub.s32 %v518, %v520
      %v522 = vrot.slane %v514, %v521
      %v524 = vunpack.c.l.s4 1934713408
      %v525 = vunpack.c.0.s8 %v524
      %v526 = vlaneseq
      %v527 = vshrl.u32 %v526, 7
      %v528 = vsub.s32 %v525, %v527
      %v529 = vrot.slane %v515, %v528
      %v530 = vcombine.low %v497, %v513
      %v531 = vcombine.high %v497, %v513
      %v533 = vunpack.c.l.s4 1934713408
      %v534 = vunpack.c.0.s8 %v533
      %v535 = vlaneseq
      %v536 = vshrl.u32 %v535, 7
      %v537 = vsub.s32 %v534, %v536
      %v538 = vrot.slane %v530, %v537
      %v540 = vunpack.c.l.s4 1934713408
      %v541 = vunpack.c.0.s8 %v540
      %v542 = vlaneseq
      %v543 = vshrl.u32 %v542, 7
      %v544 = vsub.s32 %v541, %v543
      %v545 = vrot.slane %v531, %v544
      %v546 = vcombine.high %v522, 0.0
      %v547 = vcombine.high %v529, 0.0
      %v548 = vcombine.high %v538, 0.0
      %v549 = vcombine.high %v545, 0.0
      %v550 = vlaneseq
      %v551 = vand.u32 %v550, 127
      %vm552 = vcmask 257024
      %v553 = vsel %vm552, %v522, inf
      %554 = vmin.xlane.f32.xlu0 %v553
      %v555 = vpop.xlane.xlu0 %554
      %v556 = vsel %vm552, %v546, inf
      %557 = vmin.xlane.f32.xlu0 %v556
      %v558 = vpop.xlane.xlu0 %557
      %v559 = vsel %vm552, %v529, inf
      %560 = vmin.xlane.f32.xlu0 %v559
      %v561 = vpop.xlane.xlu0 %560
      %v562 = vsel %vm552, %v547, inf
      %563 = vmin.xlane.f32.xlu0 %v562
      %v564 = vpop.xlane.xlu0 %563
      %v565 = vsel %vm552, %v538, inf
      %566 = vmin.xlane.f32.xlu0 %v565
      %v567 = vpop.xlane.xlu0 %566
      %v568 = vsel %vm552, %v548, inf
      %569 = vmin.xlane.f32.xlu0 %v568
      %v570 = vpop.xlane.xlu0 %569
      %v571 = vsel %vm552, %v545, inf
      %572 = vmin.xlane.f32.xlu0 %v571
      %v573 = vpop.xlane.xlu0 %572
      %v574 = vsel %vm552, %v549, inf
      %575 = vmin.xlane.f32.xlu0 %v574
      %v576 = vpop.xlane.xlu0 %575
      %vm577 = vcmp.le.f32.partialorder %v522, %v555
      %vm578 = vcmp.le.f32.partialorder %v546, %v558
      %vm579 = vcmp.le.f32.partialorder %v529, %v561
      %vm580 = vcmp.le.f32.partialorder %v547, %v564
      %vm581 = vcmp.le.f32.partialorder %v538, %v567
      %vm582 = vcmp.le.f32.partialorder %v548, %v570
      %vm583 = vcmp.le.f32.partialorder %v545, %v573
      %vm584 = vcmp.le.f32.partialorder %v549, %v576
      %v585 = vsel %vm577, %v551, 32
      %v586 = vsel %vm578, %v551, 32
      %v587 = vsel %vm579, %v551, 32
      %v588 = vsel %vm580, %v551, 32
      %v589 = vsel %vm581, %v551, 32
      %v590 = vsel %vm582, %v551, 32
      %v591 = vsel %vm583, %v551, 32
      %v592 = vsel %vm584, %v551, 32
      %v593 = vsel %vm552, %v585, 2147483647
      %v594 = vand.u32 %v593, 65535
      %v595 = vshra.s32 %v593, 16
      %v596 = vcvt.s32.f32 %v594
      %v597 = vcvt.s32.f32 %v595
      %598 = vmin.xlane.f32.xlu0 %v597
      %v599 = vpop.xlane.xlu0 %598
      %vm600 = vcmp.eq.f32.partialorder %v597, %v599
      %v601 = vsel %vm600, %v596, inf
      %602 = vmin.xlane.f32.xlu0 %v601
      %v603 = vpop.xlane.xlu0 %602
      %v604 = vcvt.f32.s32 %v603
      %v605 = vcvt.f32.s32 %v599
      %v606 = vshll.u32 %v605, 16
      %v607 = vadd.s32 %v606, %v604
      %v608 = vsel %vm552, %v586, 2147483647
      %v609 = vand.u32 %v608, 65535
      %v610 = vshra.s32 %v608, 16
      %v611 = vcvt.s32.f32 %v609
      %v612 = vcvt.s32.f32 %v610
      %613 = vmin.xlane.f32.xlu0 %v612
      %v614 = vpop.xlane.xlu0 %613
      %vm615 = vcmp.eq.f32.partialorder %v612, %v614
      %v616 = vsel %vm615, %v611, inf
      %617 = vmin.xlane.f32.xlu0 %v616
      %v618 = vpop.xlane.xlu0 %617
      %v619 = vcvt.f32.s32 %v618
      %v620 = vcvt.f32.s32 %v614
      %v621 = vshll.u32 %v620, 16
      %v622 = vadd.s32 %v621, %v619
      %v623 = vsel %vm552, %v587, 2147483647
      %v624 = vand.u32 %v623, 65535
      %v625 = vshra.s32 %v623, 16
      %v626 = vcvt.s32.f32 %v624
      %v627 = vcvt.s32.f32 %v625
      %628 = vmin.xlane.f32.xlu0 %v627
      %v629 = vpop.xlane.xlu0 %628
      %vm630 = vcmp.eq.f32.partialorder %v627, %v629
      %v631 = vsel %vm630, %v626, inf
      %632 = vmin.xlane.f32.xlu0 %v631
      %v633 = vpop.xlane.xlu0 %632
      %v634 = vcvt.f32.s32 %v633
      %v635 = vcvt.f32.s32 %v629
      %v636 = vshll.u32 %v635, 16
      %v637 = vadd.s32 %v636, %v634
      %v638 = vsel %vm552, %v588, 2147483647
      %v639 = vand.u32 %v638, 65535
      %v640 = vshra.s32 %v638, 16
      %v641 = vcvt.s32.f32 %v639
      %v642 = vcvt.s32.f32 %v640
      %643 = vmin.xlane.f32.xlu0 %v642
      %v644 = vpop.xlane.xlu0 %643
      %vm645 = vcmp.eq.f32.partialorder %v642, %v644
      %v646 = vsel %vm645, %v641, inf
      %647 = vmin.xlane.f32.xlu0 %v646
      %v648 = vpop.xlane.xlu0 %647
      %v649 = vcvt.f32.s32 %v648
      %v650 = vcvt.f32.s32 %v644
      %v651 = vshll.u32 %v650, 16
      %v652 = vadd.s32 %v651, %v649
      %v653 = vsel %vm552, %v589, 2147483647
      %v654 = vand.u32 %v653, 65535
      %v655 = vshra.s32 %v653, 16
      %v656 = vcvt.s32.f32 %v654
      %v657 = vcvt.s32.f32 %v655
      %658 = vmin.xlane.f32.xlu0 %v657
      %v659 = vpop.xlane.xlu0 %658
      %vm660 = vcmp.eq.f32.partialorder %v657, %v659
      %v661 = vsel %vm660, %v656, inf
      %662 = vmin.xlane.f32.xlu0 %v661
      %v663 = vpop.xlane.xlu0 %662
      %v664 = vcvt.f32.s32 %v663
      %v665 = vcvt.f32.s32 %v659
      %v666 = vshll.u32 %v665, 16
      %v667 = vadd.s32 %v666, %v664
      %v668 = vsel %vm552, %v590, 2147483647
      %v669 = vand.u32 %v668, 65535
      %v670 = vshra.s32 %v668, 16
      %v671 = vcvt.s32.f32 %v669
      %v672 = vcvt.s32.f32 %v670
      %673 = vmin.xlane.f32.xlu0 %v672
      %v674 = vpop.xlane.xlu0 %673
      %vm675 = vcmp.eq.f32.partialorder %v672, %v674
      %v676 = vsel %vm675, %v671, inf
      %677 = vmin.xlane.f32.xlu0 %v676
      %v678 = vpop.xlane.xlu0 %677
      %v679 = vcvt.f32.s32 %v678
      %v680 = vcvt.f32.s32 %v674
      %v681 = vshll.u32 %v680, 16
      %v682 = vadd.s32 %v681, %v679
      %v683 = vsel %vm552, %v591, 2147483647
      %v684 = vand.u32 %v683, 65535
      %v685 = vshra.s32 %v683, 16
      %v686 = vcvt.s32.f32 %v684
      %v687 = vcvt.s32.f32 %v685
      %688 = vmin.xlane.f32.xlu0 %v687
      %v689 = vpop.xlane.xlu0 %688
      %vm690 = vcmp.eq.f32.partialorder %v687, %v689
      %v691 = vsel %vm690, %v686, inf
      %692 = vmin.xlane.f32.xlu0 %v691
      %v693 = vpop.xlane.xlu0 %692
      %v694 = vcvt.f32.s32 %v693
      %v695 = vcvt.f32.s32 %v689
      %v696 = vshll.u32 %v695, 16
      %v697 = vadd.s32 %v696, %v694
      %v698 = vsel %vm552, %v592, 2147483647
      %v699 = vand.u32 %v698, 65535
      %v700 = vshra.s32 %v698, 16
      %v701 = vcvt.s32.f32 %v699
      %v702 = vcvt.s32.f32 %v700
      %703 = vmin.xlane.f32.xlu0 %v702
      %v704 = vpop.xlane.xlu0 %703
      %vm705 = vcmp.eq.f32.partialorder %v702, %v704
      %v706 = vsel %vm705, %v701, inf
      %707 = vmin.xlane.f32.xlu0 %v706
      %v708 = vpop.xlane.xlu0 %707
      %v709 = vcvt.f32.s32 %v708
      %v710 = vcvt.f32.s32 %v704
      %v711 = vshll.u32 %v710, 16
      %v712 = vadd.s32 %v711, %v709
      %vm713 = vcmp.eq.s32.totalorder %v551, %v607
      %vm714 = vcmp.eq.s32.totalorder %v551, %v622
      %vm715 = vcmp.eq.s32.totalorder %v551, %v637
      %vm716 = vcmp.eq.s32.totalorder %v551, %v652
      %vm717 = vcmp.eq.s32.totalorder %v551, %v667
      %vm718 = vcmp.eq.s32.totalorder %v551, %v682
      %vm719 = vcmp.eq.s32.totalorder %v551, %v697
      %vm720 = vcmp.eq.s32.totalorder %v551, %v712
      %v721 = vsel %vm713, 1, 0
      %v722 = vsel %vm714, 1, 0
      %v723 = vsel %vm715, 1, 0
      %v724 = vsel %vm716, 1, 0
      %v725 = vsel %vm717, 1, 0
      %v726 = vsel %vm718, 1, 0
      %v727 = vsel %vm719, 1, 0
      %v728 = vsel %vm720, 1, 0
      %v729 = vcvt.s32.f32 %v721
      %v730 = vcvt.s32.f32 %v722
      %v731 = vcvt.s32.f32 %v723
      %v732 = vcvt.s32.f32 %v724
      %v733 = vcvt.s32.f32 %v725
      %v734 = vcvt.s32.f32 %v726
      %v735 = vcvt.s32.f32 %v727
      %v736 = vcvt.s32.f32 %v728
      %v737 = vcombine.low %v729, %v731
      %v739 = vunpack.c.l.s4 1983009808
      %v740 = vunpack.c.0.s8 %v739
      %v741 = vlaneseq
      %v742 = vshrl.u32 %v741, 7
      %v743 = vsub.s32 %v740, %v742
      %v744 = vrot.slane %v737, %v743
      %v745 = vcombine.low %v730, %v732
      %v747 = vunpack.c.l.s4 1983009808
      %v748 = vunpack.c.0.s8 %v747
      %v749 = vlaneseq
      %v750 = vshrl.u32 %v749, 7
      %v751 = vsub.s32 %v748, %v750
      %v752 = vrot.slane %v745, %v751
      %v753 = vcombine.low %v733, %v735
      %v755 = vunpack.c.l.s4 1983009808
      %v756 = vunpack.c.0.s8 %v755
      %v757 = vlaneseq
      %v758 = vshrl.u32 %v757, 7
      %v759 = vsub.s32 %v756, %v758
      %v760 = vrot.slane %v753, %v759
      %v761 = vcombine.low %v734, %v736
      %v763 = vunpack.c.l.s4 1983009808
      %v764 = vunpack.c.0.s8 %v763
      %v765 = vlaneseq
      %v766 = vshrl.u32 %v765, 7
      %v767 = vsub.s32 %v764, %v766
      %v768 = vrot.slane %v761, %v767
      %v769 = vcombine.low %v744, %v752
      %v770 = vcombine.high %v744, %v752
      %v772 = vunpack.c.l.s4 1934713408
      %v773 = vunpack.c.0.s8 %v772
      %v774 = vlaneseq
      %v775 = vshrl.u32 %v774, 7
      %v776 = vsub.s32 %v773, %v775
      %v777 = vrot.slane %v769, %v776
      %v779 = vunpack.c.l.s4 1934713408
      %v780 = vunpack.c.0.s8 %v779
      %v781 = vlaneseq
      %v782 = vshrl.u32 %v781, 7
      %v783 = vsub.s32 %v780, %v782
      %v784 = vrot.slane %v770, %v783
      %v785 = vcombine.low %v760, %v768
      %v786 = vcombine.high %v760, %v768
      %v788 = vunpack.c.l.s4 1934713408
      %v789 = vunpack.c.0.s8 %v788
      %v790 = vlaneseq
      %v791 = vshrl.u32 %v790, 7
      %v792 = vsub.s32 %v789, %v791
      %v793 = vrot.slane %v785, %v792
      %v795 = vunpack.c.l.s4 1934713408
      %v796 = vunpack.c.0.s8 %v795
      %v797 = vlaneseq
      %v798 = vshrl.u32 %v797, 7
      %v799 = vsub.s32 %v796, %v798
      %v800 = vrot.slane %v786, %v799
      %v801 = vcombine.low %v777, %v793
      %v802 = vcombine.high %v777, %v793
      %v803 = vcombine.low %v784, %v800
      %v804 = vcombine.high %v784, %v800
      %806 = vrot.lane.b32.xlu0 %v802, 32
      %v807 = vpop.permute.xlu0 %806
      %810 = vrot.lane.b32.xlu0 %v803, 64
      %v811 = vpop.permute.xlu0 %810
      %814 = vrot.lane.b32.xlu0 %v804, 96
      %v815 = vpop.permute.xlu0 %814
      %v817 = vsel %vm231, %v801, %v807
      %vm818 = vcmask 523264
      %v819 = vsel %vm818, %v817, %v811
      %vm820 = vcmask 785408
      %v821 = vsel %vm820, %v819, %v815
      %v822 = vld [vmem:[%s1 + $0x100] sm:$0xff]
      %v823 = vld [vmem:[%s1 + $0x108] sm:$0xff]
      %v824 = vld [vmem:[%s1 + $0x110] sm:$0xff]
      %v825 = vld [vmem:[%s1 + $0x118] sm:$0xff]
      %v826 = vld [vmem:[%s1 + $0x120] sm:$0xff]
      %v827 = vld [vmem:[%s1 + $0x128] sm:$0xff]
      %v828 = vld [vmem:[%s1 + $0x130] sm:$0xff]
      %v829 = vld [vmem:[%s1 + $0x138] sm:$0xff]
      %v830 = vld [vmem:[%s1 + $0x140] sm:$0xff]
      %v831 = vld [vmem:[%s1 + $0x148] sm:$0xff]
      %v832 = vld [vmem:[%s1 + $0x150] sm:$0xff]
      %v833 = vld [vmem:[%s1 + $0x158] sm:$0xff]
      %v834 = vld [vmem:[%s1 + $0x160] sm:$0xff]
      %v835 = vld [vmem:[%s1 + $0x168] sm:$0xff]
      %v836 = vld [vmem:[%s1 + $0x170] sm:$0xff]
      %v837 = vld [vmem:[%s1 + $0x178] sm:$0xff]
      %838 = vmatprep.subr.mxu0 0.0
      %839 = vmatpush1.msra.mxu0 %v822
      %840 = vmatprep.subr.mxu0 0.0
      %841 = vmatpush1.msra.mxu0 %v823
      %842 = vmatprep.subr.mxu0 0.0
      %843 = vmatpush1.msra.mxu0 %v824
      %844 = vmatprep.subr.mxu0 0.0
      %845 = vmatpush1.msra.mxu0 %v825
      %846 = vmatprep.subr.mxu0 0.0
      %847 = vmatpush1.msra.mxu0 %v826
      %848 = vmatprep.subr.mxu0 0.0
      %849 = vmatpush1.msra.mxu0 %v827
      %850 = vmatprep.subr.mxu0 0.0
      %851 = vmatpush1.msra.mxu0 %v828
      %852 = vmatprep.subr.mxu0 0.0
      %853 = vmatpush1.msra.mxu0 %v829
      %854 = vmatprep.subr.mxu0 0.0
      %855 = vmatpush1.msra.mxu0 %v830
      %856 = vmatprep.subr.mxu0 0.0
      %857 = vmatpush1.msra.mxu0 %v831
      %858 = vmatprep.subr.mxu0 0.0
      %859 = vmatpush1.msra.mxu0 %v832
      %860 = vmatprep.subr.mxu0 0.0
      %861 = vmatpush1.msra.mxu0 %v833
      %862 = vmatprep.subr.mxu0 0.0
      %863 = vmatpush1.msra.mxu0 %v834
      %864 = vmatprep.subr.mxu0 0.0
      %865 = vmatpush1.msra.mxu0 %v835
      %866 = vmatprep.subr.mxu0 0.0
      %867 = vmatpush1.msra.mxu0 %v836
      %868 = vmatprep.subr.mxu0 0.0
      %869 = vmatpush1.msra.mxu0 %v837
      %870 = vmatprep.subr.mxu0 0.0
      %871 = vmatpush1.msra.mxu0 0.0
      %872 = vmatprep.subr.mxu0 0.0
      %873 = vmatpush1.msra.mxu0 0.0
      %874 = vmatprep.subr.mxu0 0.0
      %875 = vmatpush1.msra.mxu0 0.0
      %876 = vmatprep.subr.mxu0 0.0
      %877 = vmatpush1.msra.mxu0 0.0
      %878 = vmatprep.subr.mxu0 0.0
      %879 = vmatpush1.msra.mxu0 0.0
      %880 = vmatprep.subr.mxu0 0.0
      %881 = vmatpush1.msra.mxu0 0.0
      %882 = vmatprep.subr.mxu0 0.0
      %883 = vmatpush1.msra.mxu0 0.0
      %884 = vmatprep.subr.mxu0 0.0
      %885 = vmatpush1.msra.mxu0 0.0
      %886 = vmatprep.subr.mxu0 0.0
      %887 = vmatpush1.msra.mxu0 0.0
      %888 = vmatprep.subr.mxu0 0.0
      %889 = vmatpush1.msra.mxu0 0.0
      %890 = vmatprep.subr.mxu0 0.0
      %891 = vmatpush1.msra.mxu0 0.0
      %892 = vmatprep.subr.mxu0 0.0
      %893 = vmatpush1.msra.mxu0 0.0
      %894 = vmatprep.subr.mxu0 0.0
      %895 = vmatpush1.msra.mxu0 0.0
      %896 = vmatprep.subr.mxu0 0.0
      %897 = vmatpush1.msra.mxu0 0.0
      %898 = vmatprep.subr.mxu0 0.0
      %899 = vmatpush1.msra.mxu0 0.0
      %900 = vmatprep.subr.mxu0 0.0
      %901 = vmatpush1.msra.mxu0 0.0
      %902 = vmatprep.mubr.f32.mxu0 0.0
      %903 = vmatmul.mubr.f32.gmra.mrb[0].mxu0 %v821
      %v904 = vpop.f32.mrb[0].mxu0
      %v905 = vadd.f32 0.0, %v904
      %v906 = vpop.f32.mrb[0].mxu0
      %907 = vdwg.mxu0
      %v908 = vld [vmem:[%s1 + $0x68] sm:$0xff]
      %v909 = vld [vmem:[%s1 + $0x70] sm:$0xff]
      %v910 = vld [vmem:[%s1 + $0x78] sm:$0xff]
      %v911 = vld [vmem:[%s1 + $0x80] sm:$0xff]
      %v912 = vld [vmem:[%s1 + $0x88] sm:$0x1]
      %v913 = vlaneseq
      %v914 = vshrl.u32 %v913, 7
      %v915 = vsub.s32 0, %v914
      %v916 = vrot.slane %v912, %v915
      %v918 = vsel %vm231, %v905, 0
      %920 = vmatprep.subr.mxu0 0.0
      %921 = vmatpush1.msra.mxu0 %v908
      %922 = vmatprep.subr.mxu0 0.0
      %923 = vmatpush1.msra.mxu0 %v909
      %924 = vmatprep.subr.mxu0 0.0
      %925 = vmatpush1.msra.mxu0 %v910
      %926 = vmatprep.subr.mxu0 0.0
      %927 = vmatpush1.msra.mxu0 %v911
      %928 = vmatprep.subr.mxu0 0.0
      %929 = vmatpush1.msra.mxu0 0.0
      %930 = vmatprep.subr.mxu0 0.0
      %931 = vmatpush1.msra.mxu0 0.0
      %932 = vmatprep.subr.mxu0 0.0
      %933 = vmatpush1.msra.mxu0 0.0
      %934 = vmatprep.subr.mxu0 0.0
      %935 = vmatpush1.msra.mxu0 0.0
      %936 = vmatprep.subr.mxu0 0.0
      %937 = vmatpush1.msra.mxu0 0.0
      %938 = vmatprep.subr.mxu0 0.0
      %939 = vmatpush1.msra.mxu0 0.0
      %940 = vmatprep.subr.mxu0 0.0
      %941 = vmatpush1.msra.mxu0 0.0
      %942 = vmatprep.subr.mxu0 0.0
      %943 = vmatpush1.msra.mxu0 0.0
      %944 = vmatprep.subr.mxu0 0.0
      %945 = vmatpush1.msra.mxu0 0.0
      %946 = vmatprep.subr.mxu0 0.0
      %947 = vmatpush1.msra.mxu0 0.0
      %948 = vmatprep.subr.mxu0 0.0
      %949 = vmatpush1.msra.mxu0 0.0
      %950 = vmatprep.subr.mxu0 0.0
      %951 = vmatpush1.msra.mxu0 0.0
      %952 = vmatprep.subr.mxu0 0.0
      %953 = vmatpush1.msra.mxu0 0.0
      %954 = vmatprep.subr.mxu0 0.0
      %955 = vmatpush1.msra.mxu0 0.0
      %956 = vmatprep.subr.mxu0 0.0
      %957 = vmatpush1.msra.mxu0 0.0
      %958 = vmatprep.subr.mxu0 0.0
      %959 = vmatpush1.msra.mxu0 0.0
      %960 = vmatprep.subr.mxu0 0.0
      %961 = vmatpush1.msra.mxu0 0.0
      %962 = vmatprep.subr.mxu0 0.0
      %963 = vmatpush1.msra.mxu0 0.0
      %964 = vmatprep.subr.mxu0 0.0
      %965 = vmatpush1.msra.mxu0 0.0
      %966 = vmatprep.subr.mxu0 0.0
      %967 = vmatpush1.msra.mxu0 0.0
      %968 = vmatprep.subr.mxu0 0.0
      %969 = vmatpush1.msra.mxu0 0.0
      %970 = vmatprep.subr.mxu0 0.0
      %971 = vmatpush1.msra.mxu0 0.0
      %972 = vmatprep.subr.mxu0 0.0
      %973 = vmatpush1.msra.mxu0 0.0
      %974 = vmatprep.subr.mxu0 0.0
      %975 = vmatpush1.msra.mxu0 0.0
      %976 = vmatprep.subr.mxu0 0.0
      %977 = vmatpush1.msra.mxu0 0.0
      %978 = vmatprep.subr.mxu0 0.0
      %979 = vmatpush1.msra.mxu0 0.0
      %980 = vmatprep.subr.mxu0 0.0
      %981 = vmatpush1.msra.mxu0 0.0
      %982 = vmatprep.subr.mxu0 0.0
      %983 = vmatpush1.msra.mxu0 0.0
      %984 = vmatprep.mubr.f32.mxu0 0.0
      %985 = vmatmul.mubr.f32.gmra.mrb[0].mxu0 %v918
      %v986 = vpop.f32.mrb[0].mxu0
      %v987 = vadd.f32 %v916, %v986
      %v988 = vpop.f32.mrb[0].mxu0
      %989 = vdwg.mxu0
      %v990 = vmax.f32 %v987, 0.0
      %v991 = vld [vmem:[%s1 + $0x90] sm:$0xff]
      %v992 = vld [vmem:[%s1 + $0x98] sm:$0xff]
      %v993 = vld [vmem:[%s1 + $0xa0] sm:$0xff]
      %v994 = vld [vmem:[%s1 + $0xa8] sm:$0xff]
      %v995 = vld [vmem:[%s1 + $0xb0] sm:$0x1]
      %v996 = vlaneseq
      %v997 = vshrl.u32 %v996, 7
      %v998 = vsub.s32 0, %v997
      %v999 = vrot.slane %v995, %v998
      %v1001 = vsel %vm231, %v990, 0
      %1003 = vmatprep.subr.mxu0 0.0
      %1004 = vmatpush1.msra.mxu0 %v991
      %1005 = vmatprep.subr.mxu0 0.0
      %1006 = vmatpush1.msra.mxu0 %v992
      %1007 = vmatprep.subr.mxu0 0.0
      %1008 = vmatpush1.msra.mxu0 %v993
      %1009 = vmatprep.subr.mxu0 0.0
      %1010 = vmatpush1.msra.mxu0 %v994
      %1011 = vmatprep.subr.mxu0 0.0
      %1012 = vmatpush1.msra.mxu0 0.0
      %1013 = vmatprep.subr.mxu0 0.0
      %1014 = vmatpush1.msra.mxu0 0.0
      %1015 = vmatprep.subr.mxu0 0.0
      %1016 = vmatpush1.msra.mxu0 0.0
      %1017 = vmatprep.subr.mxu0 0.0
      %1018 = vmatpush1.msra.mxu0 0.0
      %1019 = vmatprep.subr.mxu0 0.0
      %1020 = vmatpush1.msra.mxu0 0.0
      %1021 = vmatprep.subr.mxu0 0.0
      %1022 = vmatpush1.msra.mxu0 0.0
      %1023 = vmatprep.subr.mxu0 0.0
      %1024 = vmatpush1.msra.mxu0 0.0
      %1025 = vmatprep.subr.mxu0 0.0
      %1026 = vmatpush1.msra.mxu0 0.0
      %1027 = vmatprep.subr.mxu0 0.0
      %1028 = vmatpush1.msra.mxu0 0.0
      %1029 = vmatprep.subr.mxu0 0.0
      %1030 = vmatpush1.msra.mxu0 0.0
      %1031 = vmatprep.subr.mxu0 0.0
      %1032 = vmatpush1.msra.mxu0 0.0
      %1033 = vmatprep.subr.mxu0 0.0
      %1034 = vmatpush1.msra.mxu0 0.0
      %1035 = vmatprep.subr.mxu0 0.0
      %1036 = vmatpush1.msra.mxu0 0.0
      %1037 = vmatprep.subr.mxu0 0.0
      %1038 = vmatpush1.msra.mxu0 0.0
      %1039 = vmatprep.subr.mxu0 0.0
      %1040 = vmatpush1.msra.mxu0 0.0
      %1041 = vmatprep.subr.mxu0 0.0
      %1042 = vmatpush1.msra.mxu0 0.0
      %1043 = vmatprep.subr.mxu0 0.0
      %1044 = vmatpush1.msra.mxu0 0.0
      %1045 = vmatprep.subr.mxu0 0.0
      %1046 = vmatpush1.msra.mxu0 0.0
      %1047 = vmatprep.subr.mxu0 0.0
      %1048 = vmatpush1.msra.mxu0 0.0
      %1049 = vmatprep.subr.mxu0 0.0
      %1050 = vmatpush1.msra.mxu0 0.0
      %1051 = vmatprep.subr.mxu0 0.0
      %1052 = vmatpush1.msra.mxu0 0.0
      %1053 = vmatprep.subr.mxu0 0.0
      %1054 = vmatpush1.msra.mxu0 0.0
      %1055 = vmatprep.subr.mxu0 0.0
      %1056 = vmatpush1.msra.mxu0 0.0
      %1057 = vmatprep.subr.mxu0 0.0
      %1058 = vmatpush1.msra.mxu0 0.0
      %1059 = vmatprep.subr.mxu0 0.0
      %1060 = vmatpush1.msra.mxu0 0.0
      %1061 = vmatprep.subr.mxu0 0.0
      %1062 = vmatpush1.msra.mxu0 0.0
      %1063 = vmatprep.subr.mxu0 0.0
      %1064 = vmatpush1.msra.mxu0 0.0
      %1065 = vmatprep.subr.mxu0 0.0
      %1066 = vmatpush1.msra.mxu0 0.0
      %1067 = vmatprep.mubr.f32.mxu0 0.0
      %1068 = vmatmul.mubr.f32.gmra.mrb[0].mxu0 %v1001
      %v1069 = vpop.f32.mrb[0].mxu0
      %v1070 = vadd.f32 %v999, %v1069
      %v1071 = vpop.f32.mrb[0].mxu0
      %1072 = vdwg.mxu0
      %v1073 = vmax.f32 %v1070, 0.0
      %v1074 = vld [vmem:[%s1 + $0xb8] sm:$0xff]
      %v1075 = vld [vmem:[%s1 + $0xc0] sm:$0xff]
      %v1076 = vld [vmem:[%s1 + $0xc8] sm:$0xff]
      %v1077 = vld [vmem:[%s1 + $0xd0] sm:$0xff]
      %v1078 = vld [vmem:[%s1 + $0xd8] sm:$0x1]
      %v1079 = vlaneseq
      %v1080 = vshrl.u32 %v1079, 7
      %v1081 = vsub.s32 0, %v1080
      %v1082 = vrot.slane %v1078, %v1081
      %v1084 = vsel %vm231, %v1073, 0
      %1086 = vmatprep.subr.mxu0 0.0
      %1087 = vmatpush1.msra.mxu0 %v1074
      %1088 = vmatprep.subr.mxu0 0.0
      %1089 = vmatpush1.msra.mxu0 %v1075
      %1090 = vmatprep.subr.mxu0 0.0
      %1091 = vmatpush1.msra.mxu0 %v1076
      %1092 = vmatprep.subr.mxu0 0.0
      %1093 = vmatpush1.msra.mxu0 %v1077
      %1094 = vmatprep.subr.mxu0 0.0
      %1095 = vmatpush1.msra.mxu0 0.0
      %1096 = vmatprep.subr.mxu0 0.0
      %1097 = vmatpush1.msra.mxu0 0.0
      %1098 = vmatprep.subr.mxu0 0.0
      %1099 = vmatpush1.msra.mxu0 0.0
      %1100 = vmatprep.subr.mxu0 0.0
      %1101 = vmatpush1.msra.mxu0 0.0
      %1102 = vmatprep.subr.mxu0 0.0
      %1103 = vmatpush1.msra.mxu0 0.0
      %1104 = vmatprep.subr.mxu0 0.0
      %1105 = vmatpush1.msra.mxu0 0.0
      %1106 = vmatprep.subr.mxu0 0.0
      %1107 = vmatpush1.msra.mxu0 0.0
      %1108 = vmatprep.subr.mxu0 0.0
      %1109 = vmatpush1.msra.mxu0 0.0
      %1110 = vmatprep.subr.mxu0 0.0
      %1111 = vmatpush1.msra.mxu0 0.0
      %1112 = vmatprep.subr.mxu0 0.0
      %1113 = vmatpush1.msra.mxu0 0.0
      %1114 = vmatprep.subr.mxu0 0.0
      %1115 = vmatpush1.msra.mxu0 0.0
      %1116 = vmatprep.subr.mxu0 0.0
      %1117 = vmatpush1.msra.mxu0 0.0
      %1118 = vmatprep.subr.mxu0 0.0
      %1119 = vmatpush1.msra.mxu0 0.0
      %1120 = vmatprep.subr.mxu0 0.0
      %1121 = vmatpush1.msra.mxu0 0.0
      %1122 = vmatprep.subr.mxu0 0.0
      %1123 = vmatpush1.msra.mxu0 0.0
      %1124 = vmatprep.subr.mxu0 0.0
      %1125 = vmatpush1.msra.mxu0 0.0
      %1126 = vmatprep.subr.mxu0 0.0
      %1127 = vmatpush1.msra.mxu0 0.0
      %1128 = vmatprep.subr.mxu0 0.0
      %1129 = vmatpush1.msra.mxu0 0.0
      %1130 = vmatprep.subr.mxu0 0.0
      %1131 = vmatpush1.msra.mxu0 0.0
      %1132 = vmatprep.subr.mxu0 0.0
      %1133 = vmatpush1.msra.mxu0 0.0
      %1134 = vmatprep.subr.mxu0 0.0
      %1135 = vmatpush1.msra.mxu0 0.0
      %1136 = vmatprep.subr.mxu0 0.0
      %1137 = vmatpush1.msra.mxu0 0.0
      %1138 = vmatprep.subr.mxu0 0.0
      %1139 = vmatpush1.msra.mxu0 0.0
      %1140 = vmatprep.subr.mxu0 0.0
      %1141 = vmatpush1.msra.mxu0 0.0
      %1142 = vmatprep.subr.mxu0 0.0
      %1143 = vmatpush1.msra.mxu0 0.0
      %1144 = vmatprep.subr.mxu0 0.0
      %1145 = vmatpush1.msra.mxu0 0.0
      %1146 = vmatprep.subr.mxu0 0.0
      %1147 = vmatpush1.msra.mxu0 0.0
      %1148 = vmatprep.subr.mxu0 0.0
      %1149 = vmatpush1.msra.mxu0 0.0
      %1150 = vmatprep.mubr.f32.mxu0 0.0
      %1151 = vmatmul.mubr.f32.gmra.mrb[0].mxu0 %v1084
      %v1152 = vpop.f32.mrb[0].mxu0
      %v1153 = vadd.f32 %v1082, %v1152
      %v1154 = vpop.f32.mrb[0].mxu0
      %1155 = vdwg.mxu0
      %v1156 = vcvt.s32.f32 %v607
      %v1157 = vcvt.s32.f32 %v622
      %v1158 = vcvt.s32.f32 %v637
      %v1159 = vcvt.s32.f32 %v652
      %v1160 = vcvt.s32.f32 %v667
      %v1161 = vcvt.s32.f32 %v682
      %v1162 = vcvt.s32.f32 %v697
      %v1163 = vcvt.s32.f32 %v712
      %1164 = vrot.lane.b32.xlu0 %v905, 32
      %v1165 = vpop.permute.xlu0 %1164
      %1168 = vrot.lane.b32.xlu0 %v1153, 64
      %v1169 = vpop.permute.xlu0 %1168
      %v1179 = vadd.s32 %v551, 4294967216
      %v1180 = vlaneseq
      %v1181 = vshrl.u32 %v1180, 7
      %v1182 = vsub.s32 %v1179, %v1181
      %v1183 = vrot.slane %v1156, %v1182
      %v1184 = vlaneseq
      %v1185 = vshrl.u32 %v1184, 7
      %v1186 = vsub.s32 %v1179, %v1185
      %v1187 = vrot.slane %v1157, %v1186
      %v1188 = vlaneseq
      %v1189 = vshrl.u32 %v1188, 7
      %v1190 = vsub.s32 %v1179, %v1189
      %v1191 = vrot.slane %v1158, %v1190
      %v1192 = vlaneseq
      %v1193 = vshrl.u32 %v1192, 7
      %v1194 = vsub.s32 %v1179, %v1193
      %v1195 = vrot.slane %v1159, %v1194
      %v1196 = vlaneseq
      %v1197 = vshrl.u32 %v1196, 7
      %v1198 = vsub.s32 %v1179, %v1197
      %v1199 = vrot.slane %v1160, %v1198
      %v1200 = vlaneseq
      %v1201 = vshrl.u32 %v1200, 7
      %v1202 = vsub.s32 %v1179, %v1201
      %v1203 = vrot.slane %v1161, %v1202
      %v1204 = vlaneseq
      %v1205 = vshrl.u32 %v1204, 7
      %v1206 = vsub.s32 %v1179, %v1205
      %v1207 = vrot.slane %v1162, %v1206
      %v1208 = vlaneseq
      %v1209 = vshrl.u32 %v1208, 7
      %v1210 = vsub.s32 %v1179, %v1209
      %v1211 = vrot.slane %v1163, %v1210
      %vm1212 = vcmask 1041409
      %v1213 = vsel %vm1212, %v1187, %v1183
      %vm1214 = vcmask 1042434
      %v1215 = vsel %vm1214, %v1191, %v1213
      %vm1216 = vcmask 1043459
      %v1217 = vsel %vm1216, %v1195, %v1215
      %vm1218 = vcmask 1044484
      %v1219 = vsel %vm1218, %v1199, %v1217
      %vm1220 = vcmask 1045509
      %v1221 = vsel %vm1220, %v1203, %v1219
      %vm1222 = vcmask 1046534
      %v1223 = vsel %vm1222, %v1207, %v1221
      %vm1224 = vcmask 1047559
      %v1225 = vsel %vm1224, %v1211, %v1223
      %v1227 = vsel %vm231, %v385, %v1165
      %v1228 = vsel %vm818, %v1227, %v1169
      %vm1229 = vcmask 654336
      %v1230 = vsel %vm1229, %v1228, %v1225
      %vm1231 = vcmask 687104
      %v1232 = vsel %vm1231, %v1230, 0.0
      %1233 = vst [vmem:[%s138] sm:$0xff] %v1232
      %p1234 = scmp.lt.s32.totalorder %s13, 1
      %s1235 = scalar_select %p1234, %s13, 1
      %s1236 = smul.addr %s1235, 8
      %s1237 = scalar_lea.vmem %s2, %s1236
      // Predicated region
      $region29: #{vqvae_forward.1} parent=27 // pred_check
        %p1238 = pneg %p78
      $region30: #{vqvae_forward.1} parent=27 // pred_check_branch
        %1240 = sbr.rel (%p1238) target = $region32
      $region31: #{vqvae_forward.1} parent=27 // pred_region
        _
      $region32: #{vqvae_forward.1} parent=27 // pred_fallthru
        _
    $region28: #{vqvae_forward.1} parent=5 // pred_fallthru
      _
    %p1241 = scmp.le.s32.totalorder 2, %s8
    // Predicated region
    $region33: #{vqvae_forward.1} parent=5 // pred_check
      %p1242 = pneg %p1241
    $region34: #{vqvae_forward.1} parent=5 // pred_check_branch
      %1244 = sbr.rel (%p1242) target = $region36
    $region35: #{vqvae_forward.1} parent=5 // pred_region
      %s1245 = ssub.s32 %s8, 2
      // Predicated region
      $region37: #{vqvae_forward.1} parent=35 // pred_check
        %p1246 = pneg %p84
      $region38: #{vqvae_forward.1} parent=35 // pred_check_branch
        %1248 = sbr.rel (%p1246) target = $region40
      $region39: #{vqvae_forward.1} parent=35 // pred_region
        %p1249 = scmp.lt.s32.totalorder %s14, 1
        %s1250 = scalar_select %p1249, %s14, 1
        %s1251 = smul.addr %s1250, 8
        %s1252 = scalar_lea.vmem %s2, %s1251
      $region40: #{vqvae_forward.1} parent=35 // pred_fallthru
        _
    $region36: #{vqvae_forward.1} parent=5 // pred_fallthru
      _
  $region6: #{vqvae_forward.1} parent=0 // loop_footer
    %s12 = sadd.s32 1, %s8
  $region7: #{vqvae_forward.1} parent=0 // loop_footer_branch
    %7 = sbr.rel target = $region3
  $region8: #{vqvae_forward.1} parent=0 // loop_exit
    _

</llo_original>
